<compile_context>
chip_gen: v7x
topology: tpu7x:2x2x1
jax: 0.10.0
libtpu: 0.0.40
codegen_flags: <defaults>
</compile_context>

<pallas_src>
import math
import numpy as np
import jax
import jax.numpy as jnp
from jax.experimental import pallas as pl
from jax.experimental.pallas import tpu as pltpu


def _round_up(x, m):
    return -(-x // m) * m


def _silu(x):
    return x * jax.nn.sigmoid(x)


# --------------------------------------------------------------------------
# Pallas kernel 1: patch-embedding conv  (Conv2d k=stride=P  ==  matmul)
# --------------------------------------------------------------------------
def _patch_embed_kernel(x_ref, w_ref, b_ref, o_ref):
    # x: (TM, C*P*P) im2col rows (f32 -> bf16), w: (C*P*P, D) bf16, b: (1, D) f32
    acc = jnp.dot(x_ref[...].astype(jnp.bfloat16), w_ref[...],
                  preferred_element_type=jnp.float32)
    o_ref[...] = (acc + b_ref[...]).astype(o_ref.dtype)


def patch_embed(x_cols, w_bf, b, *, tm_max=256):
    M, K = x_cols.shape
    D = w_bf.shape[1]
    tm = min(tm_max, _round_up(M, 8))       # multiple of 8, large when M is large
    Mp = _round_up(M, tm)                   # pad rows so no tokens are dropped
    if Mp != M:
        x_cols = jnp.pad(x_cols, ((0, Mp - M), (0, 0)))
    out = pl.pallas_call(
        _patch_embed_kernel,
        out_shape=jax.ShapeDtypeStruct((Mp, D), jnp.float32),
        grid_spec=pltpu.PrefetchScalarGridSpec(
            num_scalar_prefetch=0,
            grid=(Mp // tm,),
            in_specs=[
                pl.BlockSpec((tm, K), lambda i: (i, 0)),
                pl.BlockSpec((K, D), lambda i: (0, 0)),   # resident weight
                pl.BlockSpec((1, D), lambda i: (0, 0)),
            ],
            out_specs=pl.BlockSpec((tm, D), lambda i: (i, 0)),
        ),
        compiler_params=pltpu.CompilerParams(dimension_semantics=("parallel",)),
    )(x_cols, w_bf, b.reshape(1, D))
    return out[:M]


# --------------------------------------------------------------------------
# Pallas kernel 2: GSDecoder (MLP + fused heads + activations, lane-dense)
# --------------------------------------------------------------------------
# Head (fused) column layout:   0:63 xyz raw | 63 opacity | 64:67 scale |
#                               67:70 rgb    | 70:128 zero pad
# Output column layout (128w):  0:3 xyz | 3 opacity | 4:7 scale | 7:11 rot |
#                               11:14 rgb | 14:128 zero pad (sliced off)
def _gs_decoder_kernel(f_ref, w1_ref, b1_ref, w2_ref, b2_ref, wh_ref, bh_ref,
                       nsel_ref, coordm_ref, psig_ref, psp_ref, rot_ref, o_ref):
    x = f_ref[...].astype(jnp.bfloat16)

    # MLP(dim_in -> 128 -> 128), SiLU between and after (output_activation)
    h = _silu(jnp.dot(x, w1_ref[...], preferred_element_type=jnp.float32)
              + b1_ref[...])
    h = _silu(jnp.dot(h.astype(jnp.bfloat16), w2_ref[...],
                      preferred_element_type=jnp.float32) + b2_ref[...])

    # all four GS heads in one lane-dense (128, 128) matmul
    heads = jnp.dot(h.astype(jnp.bfloat16), wh_ref[...],
                    preferred_element_type=jnp.float32) + bh_ref[...]

    # xyz: per-axis L2 normalize + weighted coord sum via selector matmuls.
    # nsel broadcasts each axis' sum-of-squares back to its 21 lanes; pad lanes
    # get 0 -> clamped -> their contribution is zeroed by coordm's zero rows.
    sq = heads * heads
    norm_full = jnp.dot(sq, nsel_ref[...], preferred_element_type=jnp.float32)
    inv = jax.lax.rsqrt(jnp.maximum(norm_full, 1e-24))   # == 1/max(||v||, 1e-12)
    xyz = jnp.dot(heads * inv, coordm_ref[...], preferred_element_type=jnp.float32)

    # opacity + rgb: sigmoid on the whole block, permute into output lanes
    sig = jnp.dot(jax.nn.sigmoid(heads), psig_ref[...],
                  preferred_element_type=jnp.float32)
    # scale: 0.1 * softplus, permute into output lanes
    sp = jnp.dot(0.1 * jax.nn.softplus(heads), psp_ref[...],
                 preferred_element_type=jnp.float32)

    # rot is the fixed quaternion [1, 0, 0, 0] at output cols 7..10
    o_ref[...] = (xyz + sig + sp + rot_ref[...]).astype(o_ref.dtype)


def gs_decoder(feats2d, dp, *, tm_max=256):
    M, D = feats2d.shape
    H1 = dp["w1"].shape[1]
    H2 = dp["w2"].shape[1]
    HW = dp["wh"].shape[1]
    OW = dp["coordm"].shape[1]
    tm = min(tm_max, _round_up(M, 8))
    Mp = _round_up(M, tm)
    if Mp != M:
        feats2d = jnp.pad(feats2d, ((0, Mp - M), (0, 0)))
    full = lambda shape: pl.BlockSpec(shape, lambda i: (0, 0))
    out = pl.pallas_call(
        _gs_decoder_kernel,
        out_shape=jax.ShapeDtypeStruct((Mp, OW), jnp.float32),
        grid_spec=pltpu.PrefetchScalarGridSpec(
            num_scalar_prefetch=0,
            grid=(Mp // tm,),
            in_specs=[
                pl.BlockSpec((tm, D), lambda i: (i, 0)),
                full((D, H1)), full((1, H1)),
                full((H1, H2)), full((1, H2)),
                full((H2, HW)), full((1, HW)),
                full((HW, HW)),            # norm selector (block-diag ones)
                full((HW, OW)),            # coord matrix
                full((HW, OW)),            # sigmoid permutation
                full((HW, OW)),            # softplus permutation
                full((1, OW)),             # fixed rot constant
            ],
            out_specs=pl.BlockSpec((tm, OW), lambda i: (i, 0)),  # lane-dense 128
        ),
        compiler_params=pltpu.CompilerParams(dimension_semantics=("parallel",)),
    )(feats2d, dp["w1"], dp["b1"], dp["w2"], dp["b2"], dp["wh"], dp["bh"],
      dp["norm_sel"], dp["coordm"], dp["p_sig"], dp["p_sp"], dp["rot_c"])
    return out[:M, :14]


# --------------------------------------------------------------------------
# Parameter packing (fused head weights, selector / permutation matrices)
# --------------------------------------------------------------------------
def pack_decoder_params(p, head_pad=128, out_pad=128):
    mlp_dim = np.asarray(p["w2"]).shape[1]
    coords = np.asarray(p["coords"])
    nc = coords.shape[1]                       # 21
    c_op, c_sc, c_rgb = 3 * nc, 3 * nc + 1, 3 * nc + 4

    wh = np.zeros((mlp_dim, head_pad), np.float32)
    bh = np.zeros((head_pad,), np.float32)
    wh[:, 0:3 * nc] = np.asarray(p["w_xyz"]);   bh[0:3 * nc] = np.asarray(p["b_xyz"])
    wh[:, c_op:c_op + 1] = np.asarray(p["w_op"]); bh[c_op:c_op + 1] = np.asarray(p["b_op"])
    wh[:, c_sc:c_sc + 3] = np.asarray(p["w_sc"]); bh[c_sc:c_sc + 3] = np.asarray(p["b_sc"])
    wh[:, c_rgb:c_rgb + 3] = np.asarray(p["w_rgb"]); bh[c_rgb:c_rgb + 3] = np.asarray(p["b_rgb"])

    # block-diagonal ones: broadcasts each axis' sum-of-squares to its 21 lanes
    norm_sel = np.zeros((head_pad, head_pad), np.float32)
    for a in range(3):
        norm_sel[a * nc:(a + 1) * nc, a * nc:(a + 1) * nc] = 1.0

    # coord matrix: head col a*21+j -> out col a with weight coords[a, j]
    coordm = np.zeros((head_pad, out_pad), np.float32)
    for a in range(3):
        coordm[a * nc:(a + 1) * nc, a] = coords[a]

    # sigmoid permutation: opacity 63 -> out 3 ; rgb 67..69 -> out 11..13
    p_sig = np.zeros((head_pad, out_pad), np.float32)
    p_sig[c_op, 3] = 1.0
    for j in range(3):
        p_sig[c_rgb + j, 11 + j] = 1.0

    # softplus permutation: scale 64..66 -> out 4..6
    p_sp = np.zeros((head_pad, out_pad), np.float32)
    for j in range(3):
        p_sp[c_sc + j, 4 + j] = 1.0

    # fixed rot quaternion [1, 0, 0, 0] at out cols 7..10
    rot_c = np.zeros((out_pad,), np.float32)
    rot_c[7] = 1.0

    return {
        "w1": jnp.asarray(p["w1"], jnp.bfloat16),
        "b1": jnp.asarray(p["b1"], jnp.float32).reshape(1, -1),
        "w2": jnp.asarray(p["w2"], jnp.bfloat16),
        "b2": jnp.asarray(p["b2"], jnp.float32).reshape(1, -1),
        "wh": jnp.asarray(wh, jnp.bfloat16),
        "bh": jnp.asarray(bh, jnp.float32).reshape(1, -1),
        "norm_sel": jnp.asarray(norm_sel),
        "coordm": jnp.asarray(coordm),
        "p_sig": jnp.asarray(p_sig),
        "p_sp": jnp.asarray(p_sp),
        "rot_c": jnp.asarray(rot_c).reshape(1, -1),
    }


def pack_params(params, opt):
    D, P, C = opt["gamba_dim"], opt["patch_size"], 9
    stem_w = np.asarray(params["stem_w"]).reshape(D, C * P * P).T  # (C*P*P, D)
    return {
        "stem_w": jnp.asarray(stem_w, jnp.bfloat16),
        "stem_b": jnp.asarray(params["stem_b"], jnp.float32),
        "dec": pack_decoder_params(params),
    }


# --------------------------------------------------------------------------
# Glue: im2col for the stem conv, 4-scan plucker rearrangement, full forward
# --------------------------------------------------------------------------
def im2col_patches(x_nchw, patch):
    BN, C, H, W = x_nchw.shape
    Hp, Wp = H // patch, W // patch
    x = x_nchw.reshape(BN, C, Hp, patch, Wp, patch)
    x = x.transpose(0, 2, 4, 1, 3, 5)                 # (BN, Hp, Wp, C, P, P)
    return x.reshape(BN * Hp * Wp, C * patch * patch), (BN, Hp, Wp)


def gs_predictor_forward(cond_views, cam_poses, plucker_img, packed, opt):
    del cond_views, cam_poses  # TODO(synk): Dinov2Wrapper feeds only the (stubbed) GambaFormer.
    bsz, cond_num, c, h, w = plucker_img.shape
    P, D = opt["patch_size"], opt["gamba_dim"]

    # stem_layer: Conv2d(9 -> gamba_dim, kernel=stride=patch_size), via Pallas matmul
    x = plucker_img.reshape(bsz * cond_num, c, h, w)
    cols, (BN, Hp, Wp) = im2col_patches(x, P)
    pc = patch_embed(cols, packed["stem_w"], packed["stem_b"])       # (BN*Hp*Wp, D)
    pc = pc.reshape(BN, Hp, Wp, D).transpose(0, 3, 1, 2)             # NCHW (BN, D, Hp, Wp)

    # four scan orders (flatten / transpose / flip), matching the torch code
    p1 = pc.reshape(BN, D, Hp * Wp)
    p2 = pc.transpose(0, 1, 3, 2).reshape(BN, D, Hp * Wp)
    p3 = pc[:, :, :, ::-1].reshape(BN, D, Hp * Wp)
    p4 = pc.transpose(0, 1, 3, 2)[:, :, :, ::-1].reshape(BN, D, Hp * Wp)
    plucker_cond = jnp.concatenate([p1, p2, p3, p4], axis=-1)        # (BN, D, 4*Hp*Wp)
    plucker_cond = plucker_cond.transpose(0, 2, 1).reshape(bsz, -1, D)

    # TODO(synk): GambaFormer (Mamba transformer) not provided; use the plucker
    # scan tokens directly as net_out['feats'].
    feats = plucker_cond                                             # (bsz, L, D)

    B, L, _ = feats.shape
    gs = gs_decoder(feats.reshape(B * L, D), packed["dec"])          # (B*L, 14)
    return {"pred_gs": gs.reshape(B, L, 14)}


# --------------------------------------------------------------------------
# Deterministic parameter construction (PyTorch-equivalent layouts)
# --------------------------------------------------------------------------
def init_params(key, opt, mlp_dim=128, n_neurons=128, init_density=0.1):
    D, P, C = opt["gamba_dim"], opt["patch_size"], 9
    ks = jax.random.split(key, 8)

    def xavier(k, shape):
        fan_in, fan_out = shape[0], shape[1]
        a = math.sqrt(6.0 / (fan_in + fan_out))
        return jax.random.uniform(k, shape, jnp.float32, -a, a)

    params = {
        # stem conv (PyTorch layout: (out, in, kh, kw))
        "stem_w": jax.random.normal(ks[0], (D, C, P, P), jnp.float32) * 0.02,
        "stem_b": jnp.zeros((D,), jnp.float32),
        # MLP: Linear(D,128) -> SiLU -> Linear(128,128) -> SiLU
        "w1": xavier(ks[1], (D, n_neurons)), "b1": jnp.zeros((n_neurons,), jnp.float32),
        "w2": xavier(ks[2], (n_neurons, mlp_dim)), "b2": jnp.zeros((mlp_dim,), jnp.float32),
        # gs heads (stored (in, out))
        "w_xyz": xavier(ks[3], (mlp_dim, 3 * 21)), "b_xyz": jnp.zeros((3 * 21,), jnp.float32),
        "w_op": xavier(ks[4], (mlp_dim, 1)),
        "b_op": jnp.full((1,), float(np.log(init_density / (1 - init_density))), jnp.float32),
        "w_sc": xavier(ks[5], (mlp_dim, 3)), "b_sc": jnp.full((3,), -1.8, jnp.float32),
        # rgb: weight and bias initialized to 0 (as in the module)
        "w_rgb": jnp.zeros((mlp_dim, 3), jnp.float32), "b_rgb": jnp.zeros((3,), jnp.float32),
        # coords buffer: linspace(-0.4, 0.4, 21) repeated for the 3 axes
        "coords": jnp.tile(jnp.linspace(-0.4, 0.4, 21, dtype=jnp.float32)[None, :], (3, 1)),
    }
    return params


if __name__ == "__main__":
    opt = {"gamba_dim": 32, "patch_size": 8}
    key = jax.random.PRNGKey(0)
    kp, kv, kpl = jax.random.split(key, 3)

    params = init_params(kp, opt)
    packed = pack_params(params, opt)

    bsz, cond_num, H, W = 2, 1, 16, 16
    cond_views = jax.random.normal(kv, (bsz, cond_num, 3, H, W), jnp.float32)
    cam_poses = jnp.zeros((bsz, cond_num, 12), jnp.float32)
    plucker_img = jax.random.normal(kpl, (bsz, cond_num, 9, H, W), jnp.float32)

    out = gs_predictor_forward(cond_views, cam_poses, plucker_img, packed, opt)
    gs = jax.block_until_ready(out["pred_gs"])
    assert gs.shape == (bsz, cond_num * 4 * (H // 8) * (W // 8), 14), gs.shape
    assert bool(jnp.all(jnp.isfinite(gs)))
    print("KERNEL_OK")
</pallas_src>

<mosaic_0001>
module attributes {stable_mosaic.version = 11 : i64} {
  func.func @_patch_embed_kernel(%arg0: i32, %arg1: memref<8x576xf32, #tpu.memory_space<vmem>>, %arg2: memref<576x32xbf16, #tpu.memory_space<vmem>>, %arg3: memref<1x32xf32, #tpu.memory_space<vmem>>, %arg4: memref<8x32xf32, #tpu.memory_space<vmem>>) attributes {dimension_semantics = [#tpu.dimension_semantics<parallel>], iteration_bounds = array<i64: 1>, scalar_prefetch = 0 : i64, scratch_operands = 0 : i64, tpu.core_type = #tpu.core_type<tc>, window_params = [{transform_indices = @transform_0, window_bounds = array<i64: 8, 576>}, {pipeline_mode = #tpu.pipeline_mode<synchronous>, transform_indices = @transform_1, window_bounds = array<i64: 576, 32>}, {pipeline_mode = #tpu.pipeline_mode<synchronous>, transform_indices = @transform_2, window_bounds = array<i64: 1, 32>}, {transform_indices = @transform_3, window_bounds = array<i64: 8, 32>}]} {
    %c0 = arith.constant 0 : index
    %c0_0 = arith.constant 0 : index
    %0 = vector.load %arg1[%c0, %c0_0] : memref<8x576xf32, #tpu.memory_space<vmem>>, vector<8x576xf32>
    %1 = arith.truncf %0 : vector<8x576xf32> to vector<8x576xbf16>
    %c0_1 = arith.constant 0 : index
    %c0_2 = arith.constant 0 : index
    %2 = vector.load %arg2[%c0_1, %c0_2] : memref<576x32xbf16, #tpu.memory_space<vmem>>, vector<576x32xbf16>
    %cst = arith.constant dense<0.000000e+00> : vector<8x32xf32>
    %3 = tpu.matmul %1, %2, %cst {dimension_numbers = #tpu.dot_dimension_numbers<[1], [0], [0], [1], [0, 0, 1, 1], [], []>} : vector<8x576xbf16>, vector<576x32xbf16>, vector<8x32xf32> -> vector<8x32xf32>
    %c0_3 = arith.constant 0 : index
    %c0_4 = arith.constant 0 : index
    %4 = vector.load %arg3[%c0_3, %c0_4] : memref<1x32xf32, #tpu.memory_space<vmem>>, vector<1x32xf32>
    %5 = vector.broadcast %4 : vector<1x32xf32> to vector<8x32xf32>
    %6 = arith.addf %3, %5 : vector<8x32xf32>
    %c0_5 = arith.constant 0 : index
    %c0_6 = arith.constant 0 : index
    %7 = vector.load %arg4[%c0_5, %c0_6] : memref<8x32xf32, #tpu.memory_space<vmem>>, vector<8x32xf32>
    tpu.vector_store %arg4[%c0_5, %c0_6], %6 {strides = array<i32>} : memref<8x32xf32, #tpu.memory_space<vmem>>, vector<8x32xf32>,
    return
  }
  func.func @transform_0(%arg0: i32) -> (i32, i32) {
    %c0_i32 = arith.constant 0 : i32
    %c0_i32_0 = arith.constant 0 : i32
    return %arg0, %c0_i32 : i32, i32
  }
  func.func @transform_1(%arg0: i32) -> (i32, i32) {
    %c0_i32 = arith.constant 0 : i32
    %c0_i32_0 = arith.constant 0 : i32
    %c0_i32_1 = arith.constant 0 : i32
    return %c0_i32, %c0_i32_0 : i32, i32
  }
  func.func @transform_2(%arg0: i32) -> (i32, i32) {
    %c0_i32 = arith.constant 0 : i32
    %c0_i32_0 = arith.constant 0 : i32
    %c0_i32_1 = arith.constant 0 : i32
    return %c0_i32, %c0_i32_0 : i32, i32
  }
  func.func @transform_3(%arg0: i32) -> (i32, i32) {
    %c0_i32 = arith.constant 0 : i32
    %c0_i32_0 = arith.constant 0 : i32
    return %arg0, %c0_i32 : i32, i32
  }
}

</mosaic_0001>

<llo_original>
// kernel: tpu_custom_call.1
$region0: #{tpu_custom_call.1}
  #allocation0 [shape = 'u32[]', space=smem, size = 0x4, offset = 0x4, fixed_abs, tag = 'smem constant byte address 0x4 - core index']
  #allocation1 [shape = 'u32[144,128]{1,0:T(1,128)}', space=vmem, size = 0x12000, scoped, tag = 'internal scratch']
  %s0 = inlined_call_operand.vmem [shape: f32[8,576], index: 0, kind: input, shape index: {}]
  %s1 = inlined_call_operand.vmem [shape: bf16[576,32], index: 1, kind: input, shape index: {}]
  %s2 = inlined_call_operand.vmem [shape: f32[1,32], index: 2, kind: input, shape index: {}]
  %s3 = inlined_call_operand.hbm [shape: f32[8,32], index: 3, kind: output, shape index: {}]
  %s4 = sld [smem:[#allocation0]]
  $region22: #{tpu_custom_call.1} parent=0
    _
  %s6 = ssub.s32 1, %s4
  %s7 = scalar_select 0, %s6, %s4
  $region1: #{tpu_custom_call.1} parent=0
    #allocation2 [shape = 'u8[4096]{0}', space=vmem, size = 0x1000, scoped, tag = 'output window, operand 0, single buffered']
    #allocation3 [shape = 's32[1]{0}', space=sflag, size = 0x4, scoped, tag = 'scoped memory for tpu_custom_call.1']
    %8 = vsyncpa [#allocation3], 0
    // Predicated region
    $region2: #{tpu_custom_call.1} parent=1 // pred_check
      _
    $region3: #{tpu_custom_call.1} parent=1 // pred_check_branch
      %10 = sbr.rel (0) target = $region5
    $region4: #{tpu_custom_call.1} parent=1 // pred_region
      _
    $region5: #{tpu_custom_call.1} parent=1 // pred_fallthru
      _
    // Predicated region
    $region6: #{tpu_custom_call.1} parent=1 // pred_check
      _
    $region7: #{tpu_custom_call.1} parent=1 // pred_check_branch
      %12 = sbr.rel (0) target = $region9
    $region8: #{tpu_custom_call.1} parent=1 // pred_region
      _
    $region9: #{tpu_custom_call.1} parent=1 // pred_fallthru
      _
    // Predicated region
    $region10: #{tpu_custom_call.1} parent=1 // pred_check
      _
    $region11: #{tpu_custom_call.1} parent=1 // pred_check_branch
      %14 = sbr.rel (0) target = $region13
    $region12: #{tpu_custom_call.1} parent=1 // pred_region
      _
    $region13: #{tpu_custom_call.1} parent=1 // pred_fallthru
      _
    %v16 = vld [vmem:[%s0] sm:$0xff]
    %v17 = vld [vmem:[%s0 + $0x8] sm:$0xff]
    %v18 = vld [vmem:[%s0 + $0x10] sm:$0xff]
    %v19 = vld [vmem:[%s0 + $0x18] sm:$0xff]
    %v20 = vld [vmem:[%s0 + $0x20] sm:$0xff]
    %v21 = vpack.c.bf16 %v16, %v16
    %v22 = vpack.c.bf16 %v17, %v17
    %v23 = vpack.c.bf16 %v18, %v18
    %v24 = vpack.c.bf16 %v19, %v19
    %v25 = vpack.c.bf16 %v20, %v20
    %v26 = vld [vmem:[%s1] sm:$0xf]
    %v27 = vld [vmem:[%s1 + $0x4] sm:$0xf]
    %v28 = vld [vmem:[%s1 + $0x8] sm:$0xf]
    %v29 = vld [vmem:[%s1 + $0xc] sm:$0xf]
    %v30 = vld [vmem:[%s1 + $0x10] sm:$0xf]
    %v31 = vld [vmem:[%s1 + $0x14] sm:$0xf]
    %v32 = vld [vmem:[%s1 + $0x18] sm:$0xf]
    %v33 = vld [vmem:[%s1 + $0x1c] sm:$0xf]
    %v34 = vld [vmem:[%s1 + $0x20] sm:$0xf]
    %v35 = vld [vmem:[%s1 + $0x24] sm:$0xf]
    %v36 = vld [vmem:[%s1 + $0x28] sm:$0xf]
    %v37 = vld [vmem:[%s1 + $0x2c] sm:$0xf]
    %v38 = vld [vmem:[%s1 + $0x30] sm:$0xf]
    %v39 = vld [vmem:[%s1 + $0x34] sm:$0xf]
    %v40 = vld [vmem:[%s1 + $0x38] sm:$0xf]
    %v41 = vld [vmem:[%s1 + $0x3c] sm:$0xf]
    %v42 = vld [vmem:[%s1 + $0x40] sm:$0xf]
    %v43 = vld [vmem:[%s1 + $0x44] sm:$0xf]
    %v44 = vld [vmem:[%s1 + $0x48] sm:$0xf]
    %v45 = vld [vmem:[%s1 + $0x4c] sm:$0xf]
    %v46 = vld [vmem:[%s1 + $0x50] sm:$0xf]
    %v47 = vld [vmem:[%s1 + $0x54] sm:$0xf]
    %v48 = vld [vmem:[%s1 + $0x58] sm:$0xf]
    %v49 = vld [vmem:[%s1 + $0x5c] sm:$0xf]
    %v50 = vld [vmem:[%s1 + $0x60] sm:$0xf]
    %v51 = vld [vmem:[%s1 + $0x64] sm:$0xf]
    %v52 = vld [vmem:[%s1 + $0x68] sm:$0xf]
    %v53 = vld [vmem:[%s1 + $0x6c] sm:$0xf]
    %v54 = vld [vmem:[%s1 + $0x70] sm:$0xf]
    %v55 = vld [vmem:[%s1 + $0x74] sm:$0xf]
    %v56 = vld [vmem:[%s1 + $0x78] sm:$0xf]
    %v57 = vld [vmem:[%s1 + $0x7c] sm:$0xf]
    %v58 = vld [vmem:[%s1 + $0x80] sm:$0xf]
    %v59 = vld [vmem:[%s1 + $0x84] sm:$0xf]
    %v60 = vld [vmem:[%s1 + $0x88] sm:$0xf]
    %v61 = vld [vmem:[%s1 + $0x8c] sm:$0xf]
    %v62 = vld [vmem:[%s1 + $0x90] sm:$0xf]
    %v63 = vld [vmem:[%s1 + $0x94] sm:$0xf]
    %v64 = vld [vmem:[%s1 + $0x98] sm:$0xf]
    %v65 = vld [vmem:[%s1 + $0x9c] sm:$0xf]
    %v66 = vld [vmem:[%s1 + $0xa0] sm:$0xf]
    %v67 = vld [vmem:[%s1 + $0xa4] sm:$0xf]
    %v68 = vld [vmem:[%s1 + $0xa8] sm:$0xf]
    %v69 = vld [vmem:[%s1 + $0xac] sm:$0xf]
    %v70 = vld [vmem:[%s1 + $0xb0] sm:$0xf]
    %v71 = vld [vmem:[%s1 + $0xb4] sm:$0xf]
    %v72 = vld [vmem:[%s1 + $0xb8] sm:$0xf]
    %v73 = vld [vmem:[%s1 + $0xbc] sm:$0xf]
    %v74 = vld [vmem:[%s1 + $0xc0] sm:$0xf]
    %v75 = vld [vmem:[%s1 + $0xc4] sm:$0xf]
    %v76 = vld [vmem:[%s1 + $0xc8] sm:$0xf]
    %v77 = vld [vmem:[%s1 + $0xcc] sm:$0xf]
    %v78 = vld [vmem:[%s1 + $0xd0] sm:$0xf]
    %v79 = vld [vmem:[%s1 + $0xd4] sm:$0xf]
    %v80 = vld [vmem:[%s1 + $0xd8] sm:$0xf]
    %v81 = vld [vmem:[%s1 + $0xdc] sm:$0xf]
    %v82 = vld [vmem:[%s1 + $0xe0] sm:$0xf]
    %v83 = vld [vmem:[%s1 + $0xe4] sm:$0xf]
    %v84 = vld [vmem:[%s1 + $0xe8] sm:$0xf]
    %v85 = vld [vmem:[%s1 + $0xec] sm:$0xf]
    %v86 = vld [vmem:[%s1 + $0xf0] sm:$0xf]
    %v87 = vld [vmem:[%s1 + $0xf4] sm:$0xf]
    %v88 = vld [vmem:[%s1 + $0xf8] sm:$0xf]
    %v89 = vld [vmem:[%s1 + $0xfc] sm:$0xf]
    %v90 = vld [vmem:[%s1 + $0x100] sm:$0xf]
    %v91 = vld [vmem:[%s1 + $0x104] sm:$0xf]
    %v92 = vld [vmem:[%s1 + $0x108] sm:$0xf]
    %v93 = vld [vmem:[%s1 + $0x10c] sm:$0xf]
    %v94 = vld [vmem:[%s1 + $0x110] sm:$0xf]
    %v95 = vld [vmem:[%s1 + $0x114] sm:$0xf]
    %v96 = vld [vmem:[%s1 + $0x118] sm:$0xf]
    %v97 = vld [vmem:[%s1 + $0x11c] sm:$0xf]
    %v98 = vld [vmem:[%s2] sm:$0x1]
    %v100 = vlaneseq
    %v101 = vshrl.u32 %v100, 7
    %v102 = vsub.s32 0, %v101
    %v103 = vrot.slane %v98, %v102
    %v177 = vunpack.c.l.b16 %v26
    %v178 = vunpack.c.l.b16 %v27
    %v179 = vunpack.c.l.b16 %v28
    %v180 = vunpack.c.l.b16 %v29
    %v181 = vunpack.c.l.b16 %v30
    %v182 = vunpack.c.l.b16 %v31
    %v183 = vunpack.c.l.b16 %v32
    %v184 = vunpack.c.l.b16 %v33
    %v185 = vunpack.c.l.b16 %v34
    %v186 = vunpack.c.l.b16 %v35
    %v187 = vunpack.c.l.b16 %v36
    %v188 = vunpack.c.l.b16 %v37
    %v189 = vunpack.c.l.b16 %v38
    %v190 = vunpack.c.l.b16 %v39
    %v191 = vunpack.c.l.b16 %v40
    %v192 = vunpack.c.l.b16 %v41
    %v193 = vunpack.c.l.b16 %v42
    %v194 = vunpack.c.l.b16 %v43
    %v195 = vunpack.c.l.b16 %v44
    %v196 = vunpack.c.l.b16 %v45
    %v197 = vunpack.c.l.b16 %v46
    %v198 = vunpack.c.l.b16 %v47
    %v199 = vunpack.c.l.b16 %v48
    %v200 = vunpack.c.l.b16 %v49
    %v201 = vunpack.c.l.b16 %v50
    %v202 = vunpack.c.l.b16 %v51
    %v203 = vunpack.c.l.b16 %v52
    %v204 = vunpack.c.l.b16 %v53
    %v205 = vunpack.c.l.b16 %v54
    %v206 = vunpack.c.l.b16 %v55
    %v207 = vunpack.c.l.b16 %v56
    %v208 = vunpack.c.l.b16 %v57
    %v209 = vunpack.c.l.b16 %v58
    %v210 = vunpack.c.l.b16 %v59
    %v211 = vunpack.c.l.b16 %v60
    %v212 = vunpack.c.l.b16 %v61
    %v213 = vunpack.c.l.b16 %v62
    %v214 = vunpack.c.l.b16 %v63
    %v215 = vunpack.c.l.b16 %v64
    %v216 = vunpack.c.l.b16 %v65
    %v217 = vunpack.c.l.b16 %v66
    %v218 = vunpack.c.l.b16 %v67
    %v219 = vunpack.c.l.b16 %v68
    %v220 = vunpack.c.l.b16 %v69
    %v221 = vunpack.c.l.b16 %v70
    %v222 = vunpack.c.l.b16 %v71
    %v223 = vunpack.c.l.b16 %v72
    %v224 = vunpack.c.l.b16 %v73
    %v225 = vunpack.c.l.b16 %v74
    %v226 = vunpack.c.l.b16 %v75
    %v227 = vunpack.c.l.b16 %v76
    %v228 = vunpack.c.l.b16 %v77
    %v229 = vunpack.c.l.b16 %v78
    %v230 = vunpack.c.l.b16 %v79
    %v231 = vunpack.c.l.b16 %v80
    %v232 = vunpack.c.l.b16 %v81
    %v233 = vunpack.c.l.b16 %v82
    %v234 = vunpack.c.l.b16 %v83
    %v235 = vunpack.c.l.b16 %v84
    %v236 = vunpack.c.l.b16 %v85
    %v237 = vunpack.c.l.b16 %v86
    %v238 = vunpack.c.l.b16 %v87
    %v239 = vunpack.c.l.b16 %v88
    %v240 = vunpack.c.l.b16 %v89
    %v241 = vunpack.c.l.b16 %v90
    %v242 = vunpack.c.l.b16 %v91
    %v243 = vunpack.c.l.b16 %v92
    %v244 = vunpack.c.l.b16 %v93
    %v245 = vunpack.c.l.b16 %v94
    %v246 = vunpack.c.l.b16 %v95
    %v247 = vunpack.c.l.b16 %v96
    %v248 = vunpack.c.l.b16 %v97
    %v249 = vpack.c.b16 %v178, %v177
    %v250 = vpack.c.b16 %v180, %v179
    %v251 = vpack.c.b16 %v182, %v181
    %v252 = vpack.c.b16 %v184, %v183
    %v253 = vpack.c.b16 %v186, %v185
    %v254 = vpack.c.b16 %v188, %v187
    %v255 = vpack.c.b16 %v190, %v189
    %v256 = vpack.c.b16 %v192, %v191
    %v257 = vpack.c.b16 %v194, %v193
    %v258 = vpack.c.b16 %v196, %v195
    %v259 = vpack.c.b16 %v198, %v197
    %v260 = vpack.c.b16 %v200, %v199
    %v261 = vpack.c.b16 %v202, %v201
    %v262 = vpack.c.b16 %v204, %v203
    %v263 = vpack.c.b16 %v206, %v205
    %v264 = vpack.c.b16 %v208, %v207
    %v265 = vpack.c.b16 %v210, %v209
    %v266 = vpack.c.b16 %v212, %v211
    %v267 = vpack.c.b16 %v214, %v213
    %v268 = vpack.c.b16 %v216, %v215
    %v269 = vpack.c.b16 %v218, %v217
    %v270 = vpack.c.b16 %v220, %v219
    %v271 = vpack.c.b16 %v222, %v221
    %v272 = vpack.c.b16 %v224, %v223
    %v273 = vpack.c.b16 %v226, %v225
    %v274 = vpack.c.b16 %v228, %v227
    %v275 = vpack.c.b16 %v230, %v229
    %v276 = vpack.c.b16 %v232, %v231
    %v277 = vpack.c.b16 %v234, %v233
    %v278 = vpack.c.b16 %v236, %v235
    %v279 = vpack.c.b16 %v238, %v237
    %v280 = vpack.c.b16 %v240, %v239
    %v281 = vpack.c.b16 %v242, %v241
    %v282 = vpack.c.b16 %v244, %v243
    %v283 = vpack.c.b16 %v246, %v245
    %v284 = vpack.c.b16 %v248, %v247
    %vm321 = vcmask 523264
    %v323 = vsel %vm321, %v25, 0
    %325 = vmatprep.subr.bf16.mxu0 0
    %326 = vmatpush1.bf16.msra.mxu0 %v249
    %327 = vmatprep.subr.bf16.mxu0 0
    %328 = vmatpush1.bf16.msra.mxu0 %v250
    %329 = vmatprep.subr.bf16.mxu0 0
    %330 = vmatpush1.bf16.msra.mxu0 %v251
    %331 = vmatprep.subr.bf16.mxu0 0
    %332 = vmatpush1.bf16.msra.mxu0 %v252
    %333 = vmatprep.subr.bf16.mxu0 0
    %334 = vmatpush1.bf16.msra.mxu0 %v253
    %335 = vmatprep.subr.bf16.mxu0 0
    %336 = vmatpush1.bf16.msra.mxu0 %v254
    %337 = vmatprep.subr.bf16.mxu0 0
    %338 = vmatpush1.bf16.msra.mxu0 %v255
    %339 = vmatprep.subr.bf16.mxu0 0
    %340 = vmatpush1.bf16.msra.mxu0 %v256
    %341 = vmatprep.subr.bf16.mxu0 0
    %342 = vmatpush1.bf16.msra.mxu0 %v257
    %343 = vmatprep.subr.bf16.mxu0 0
    %344 = vmatpush1.bf16.msra.mxu0 %v258
    %345 = vmatprep.subr.bf16.mxu0 0
    %346 = vmatpush1.bf16.msra.mxu0 %v259
    %347 = vmatprep.subr.bf16.mxu0 0
    %348 = vmatpush1.bf16.msra.mxu0 %v260
    %349 = vmatprep.subr.bf16.mxu0 0
    %350 = vmatpush1.bf16.msra.mxu0 %v261
    %351 = vmatprep.subr.bf16.mxu0 0
    %352 = vmatpush1.bf16.msra.mxu0 %v262
    %353 = vmatprep.subr.bf16.mxu0 0
    %354 = vmatpush1.bf16.msra.mxu0 %v263
    %355 = vmatprep.subr.bf16.mxu0 0
    %356 = vmatpush1.bf16.msra.mxu0 %v264
    %357 = vmatprep.mubr.bf16.mxu0 %v22
    %358 = vmatmul.mubr.bf16.gmra.mrb[0].mxu0 %v21
    %v359 = vpop.f32.mrb[0].mxu0
    %v360 = vadd.f32 %v103, %v359
    %v361 = vpop.f32.mrb[0].mxu0
    %v362 = vpop.f32.mrb[0].mxu0
    %v363 = vpop.f32.mrb[0].mxu0
    %364 = vdwg.mxu0
    %365 = vmatprep.subr.bf16.mxu0 0
    %366 = vmatpush1.bf16.msra.mxu0 %v265
    %367 = vmatprep.subr.bf16.mxu0 0
    %368 = vmatpush1.bf16.msra.mxu0 %v266
    %369 = vmatprep.subr.bf16.mxu0 0
    %370 = vmatpush1.bf16.msra.mxu0 %v267
    %371 = vmatprep.subr.bf16.mxu0 0
    %372 = vmatpush1.bf16.msra.mxu0 %v268
    %373 = vmatprep.subr.bf16.mxu0 0
    %374 = vmatpush1.bf16.msra.mxu0 %v269
    %375 = vmatprep.subr.bf16.mxu0 0
    %376 = vmatpush1.bf16.msra.mxu0 %v270
    %377 = vmatprep.subr.bf16.mxu0 0
    %378 = vmatpush1.bf16.msra.mxu0 %v271
    %379 = vmatprep.subr.bf16.mxu0 0
    %380 = vmatpush1.bf16.msra.mxu0 %v272
    %381 = vmatprep.subr.bf16.mxu0 0
    %382 = vmatpush1.bf16.msra.mxu0 %v273
    %383 = vmatprep.subr.bf16.mxu0 0
    %384 = vmatpush1.bf16.msra.mxu0 %v274
    %385 = vmatprep.subr.bf16.mxu0 0
    %386 = vmatpush1.bf16.msra.mxu0 %v275
    %387 = vmatprep.subr.bf16.mxu0 0
    %388 = vmatpush1.bf16.msra.mxu0 %v276
    %389 = vmatprep.subr.bf16.mxu0 0
    %390 = vmatpush1.bf16.msra.mxu0 %v277
    %391 = vmatprep.subr.bf16.mxu0 0
    %392 = vmatpush1.bf16.msra.mxu0 %v278
    %393 = vmatprep.subr.bf16.mxu0 0
    %394 = vmatpush1.bf16.msra.mxu0 %v279
    %395 = vmatprep.subr.bf16.mxu0 0
    %396 = vmatpush1.bf16.msra.mxu0 %v280
    %397 = vmatprep.mubr.bf16.mxu0 %v24
    %398 = vmatmul.mubr.bf16.gmra.mrb[0].mxu0 %v23
    %v399 = vpop.f32.mrb[0].mxu0
    %v400 = vadd.f32 %v360, %v399
    %v401 = vpop.f32.mrb[0].mxu0
    %v402 = vpop.f32.mrb[0].mxu0
    %v403 = vpop.f32.mrb[0].mxu0
    %404 = vdwg.mxu0
    %405 = vmatprep.subr.bf16.mxu0 0
    %406 = vmatpush1.bf16.msra.mxu0 %v281
    %407 = vmatprep.subr.bf16.mxu0 0
    %408 = vmatpush1.bf16.msra.mxu0 %v282
    %409 = vmatprep.subr.bf16.mxu0 0
    %410 = vmatpush1.bf16.msra.mxu0 %v283
    %411 = vmatprep.subr.bf16.mxu0 0
    %412 = vmatpush1.bf16.msra.mxu0 %v284
    %413 = vmatprep.subr.bf16.mxu0 0
    %414 = vmatpush1.bf16.msra.mxu0 0
    %415 = vmatprep.subr.bf16.mxu0 0
    %416 = vmatpush1.bf16.msra.mxu0 0
    %417 = vmatprep.subr.bf16.mxu0 0
    %418 = vmatpush1.bf16.msra.mxu0 0
    %419 = vmatprep.subr.bf16.mxu0 0
    %420 = vmatpush1.bf16.msra.mxu0 0
    %421 = vmatprep.subr.bf16.mxu0 0
    %422 = vmatpush1.bf16.msra.mxu0 0
    %423 = vmatprep.subr.bf16.mxu0 0
    %424 = vmatpush1.bf16.msra.mxu0 0
    %425 = vmatprep.subr.bf16.mxu0 0
    %426 = vmatpush1.bf16.msra.mxu0 0
    %427 = vmatprep.subr.bf16.mxu0 0
    %428 = vmatpush1.bf16.msra.mxu0 0
    %429 = vmatprep.subr.bf16.mxu0 0
    %430 = vmatpush1.bf16.msra.mxu0 0
    %431 = vmatprep.subr.bf16.mxu0 0
    %432 = vmatpush1.bf16.msra.mxu0 0
    %433 = vmatprep.subr.bf16.mxu0 0
    %434 = vmatpush1.bf16.msra.mxu0 0
    %435 = vmatprep.subr.bf16.mxu0 0
    %436 = vmatpush1.bf16.msra.mxu0 0
    %437 = vmatprep.mubr.bf16.mxu0 0
    %438 = vmatmul.mubr.bf16.gmra.mrb[0].mxu0 %v323
    %v439 = vpop.f32.mrb[0].mxu0
    %v440 = vadd.f32 %v400, %v439
    %v441 = vpop.f32.mrb[0].mxu0
    %v442 = vpop.f32.mrb[0].mxu0
    %v443 = vpop.f32.mrb[0].mxu0
    %444 = vdwg.mxu0
    %vm445 = vcmask 261120
    %446 = vst.msk [vmem:[#allocation2] sm:$0xff] %vm445, %v440
    // Predicated region
    $region14: #{tpu_custom_call.1} parent=1 // pred_check
      _
    $region15: #{tpu_custom_call.1} parent=1 // pred_check_branch
      %448 = sbr.rel (0) target = $region17
    $region16: #{tpu_custom_call.1} parent=1 // pred_region
      %s450 = ssub.s32 128, 128
      %451 = vsyncadd [#allocation3], %s450
      %s453 = sshll.u32 [#allocation2], 4
      %s454 = int_to_ptr.vmem [resolvable:$true] %s453
      %456 = dma.vmem_to_hbm [thread:$0]  %s454, 128, %s3, [#allocation3]
    $region17: #{tpu_custom_call.1} parent=1 // pred_fallthru
      _
    // Predicated region
    $region18: #{tpu_custom_call.1} parent=1 // pred_check
      _
    $region19: #{tpu_custom_call.1} parent=1 // pred_check_branch
      %458 = sbr.rel (0) target = $region21
    $region20: #{tpu_custom_call.1} parent=1 // pred_region
      %459 = dma.done [#allocation3], 128
    $region21: #{tpu_custom_call.1} parent=1 // pred_fallthru
      _
    %460 = vsyncpa [#allocation3], 1

</llo_original>
